<compile_context>
chip_gen: v5e
topology: v5e:2x2
jax: 0.10.0
libtpu: 0.0.40
codegen_flags: <defaults>
</compile_context>

<pallas_src>
import functools
import math

import jax
import jax.numpy as jnp
from jax.experimental import pallas as pl
from jax.experimental.pallas import tpu as pltpu


def _round_up(a, b):
    return (a + b - 1) // b * b


def _fused_double_conv_kernel(x_ref, w0_ref, b0_ref, w1_ref, b1_ref, o_ref,
                              *, length, tile_l, ksize, pad, compute_dtype):
    """One (batch, length-tile) grid step of the fused double convolution.

    x_ref : (C_in, L_in_pad)    whole padded length slab for this batch element
    w0_ref: (C_out, C_in  * K)  conv0 weights, taps folded into the contraction
    b0_ref: (C_out, 1)          conv0 bias (f32)
    w1_ref: (C_out, C_out * K)  conv1 weights, taps folded into the contraction
    b1_ref: (C_out, 1)          conv1 bias (f32)
    o_ref : (C_out, TILE_L)     output tile (lane-dense, TILE_L % 128 == 0)
    """
    j = pl.program_id(1)
    halo = 2 * pad                       # one-sided halo for two stacked convs
    t_in = tile_l + 2 * halo             # input window length for this tile
    t_mid = tile_l + 2 * pad             # extended intermediate length

    # Overlapping input window for this tile; start is 128-aligned.
    start = pl.multiple_of(j * tile_l, 128)
    xw = x_ref[:, pl.ds(start, t_in)]                          # (C_in, t_in)

    # ---- conv0 + ReLU: im2col -> single MXU matmul, f32 accumulation -------
    stack0 = jnp.concatenate([xw[:, k:k + t_mid] for k in range(ksize)], axis=0)
    h = jnp.dot(w0_ref[...], stack0, preferred_element_type=jnp.float32)
    h = jnp.maximum(h + b0_ref[...], 0.0)                      # (C_out, t_mid)

    # Zero the intermediate outside the true length: conv1 must see zero
    # padding there, NOT relu(bias) computed on zero-padded input.
    pos = j * tile_l - pad + jax.lax.broadcasted_iota(jnp.int32, h.shape, 1)
    h = jnp.where((pos >= 0) & (pos < length), h, 0.0)
    h = h.astype(compute_dtype)          # bf16 into the MXU on v6e/v7x

    # ---- conv1 + ReLU: im2col -> single MXU matmul, f32 epilogue -----------
    stack1 = jnp.concatenate([h[:, k:k + tile_l] for k in range(ksize)], axis=0)
    y = jnp.dot(w1_ref[...], stack1, preferred_element_type=jnp.float32)
    y = jnp.maximum(y + b1_ref[...], 0.0)

    o_ref[...] = y.astype(o_ref.dtype)


def double_convolution(x, params, *, compute_dtype=jnp.float32, tile_l_max=512):
    """Pallas equivalent of DoubleConvolution.forward (NCL layout).

    compute_dtype: jnp.float32 (default, matches the f32 reference) or
    jnp.bfloat16 (recommended on v6e/v7x: halves HBM traffic, doubles MXU rate;
    accumulation stays f32 and the stored output keeps x.dtype).
    """
    w0, b0, w1, b1 = params
    B, c_in, length = x.shape
    c_out, c_in_w, ksize = w0.shape
    assert c_in == c_in_w and w1.shape == (c_out, c_out, ksize)
    pad = (ksize - 1) // 2               # 'same' padding (K=5 -> pad=2)
    halo = 2 * pad

    # Lane-dense length tiling: TILE_L is a multiple of 128 (<= tile_l_max).
    tile_l = min(tile_l_max, _round_up(length, 128))
    num_tiles = pl.cdiv(length, tile_l)
    l_out_pad = num_tiles * tile_l
    l_in_pad = l_out_pad + 2 * halo

    # Wrapper-side layout plumbing (free relative to the convs):
    #   * one zero-pad of x for halo + tile alignment,
    #   * fold the K taps into the weight contraction: column k*C_in + c of the
    #     2-D weight equals w[:, c, k], matching the in-kernel im2col order.
    x_p = jnp.pad(x, ((0, 0), (0, 0), (halo, l_out_pad - length + halo)))
    x_p = x_p.astype(compute_dtype)
    w0_2d = jnp.transpose(w0, (0, 2, 1)).reshape(c_out, ksize * c_in)
    w1_2d = jnp.transpose(w1, (0, 2, 1)).reshape(c_out, ksize * c_out)
    w0_2d = w0_2d.astype(compute_dtype)
    w1_2d = w1_2d.astype(compute_dtype)
    b0_2d = b0.reshape(c_out, 1).astype(jnp.float32)
    b1_2d = b1.reshape(c_out, 1).astype(jnp.float32)

    kernel = functools.partial(
        _fused_double_conv_kernel,
        length=length, tile_l=tile_l, ksize=ksize, pad=pad,
        compute_dtype=compute_dtype)

    # VMEM working-set estimate; raise the scoped limit only when needed and
    # stay below v7x's 64 MiB physical VMEM.
    itemsize = jnp.dtype(compute_dtype).itemsize
    est = (2 * c_in * l_in_pad * itemsize            # double-buffered input slab
           + 2 * c_out * tile_l * x.dtype.itemsize   # double-buffered out tile
           + 4 * c_out * (tile_l + 2 * pad) * 4      # intermediate + im2col stacks
           + (c_in + c_out) * ksize * c_out * itemsize)
    vmem_limit = None
    if est > 32 * 1024 * 1024:
        vmem_limit = min(int(1.5 * est), 60 * 1024 * 1024)

    compiler_params = pltpu.CompilerParams(
        dimension_semantics=("parallel", "parallel"),
        vmem_limit_bytes=vmem_limit)

    out = pl.pallas_call(
        kernel,
        out_shape=jax.ShapeDtypeStruct((B, c_out, l_out_pad), x.dtype),
        grid=(B, num_tiles),
        in_specs=[
            # Whole padded length slab per batch element; the block index ignores
            # j so it is fetched once per batch element, not per length tile.
            pl.BlockSpec((None, c_in, l_in_pad), lambda b, j: (b, 0, 0)),
            pl.BlockSpec((c_out, ksize * c_in), lambda b, j: (0, 0)),
            pl.BlockSpec((c_out, 1), lambda b, j: (0, 0)),
            pl.BlockSpec((c_out, ksize * c_out), lambda b, j: (0, 0)),
            pl.BlockSpec((c_out, 1), lambda b, j: (0, 0)),
        ],
        out_specs=pl.BlockSpec((None, c_out, tile_l), lambda b, j: (b, 0, j)),
        compiler_params=compiler_params,
    )(x_p, w0_2d, b0_2d, w1_2d, b1_2d)

    return out[:, :, :length] if l_out_pad != length else out


def init_params(key, in_channels, out_channels, kernel_size=5):
    """Deterministic PyTorch-style (uniform +/- 1/sqrt(fan_in)) init."""
    k0w, k0b, k1w, k1b = jax.random.split(key, 4)
    bound0 = 1.0 / math.sqrt(in_channels * kernel_size)
    bound1 = 1.0 / math.sqrt(out_channels * kernel_size)
    w0 = jax.random.uniform(
        k0w, (out_channels, in_channels, kernel_size), jnp.float32,
        -bound0, bound0)
    b0 = jax.random.uniform(k0b, (out_channels,), jnp.float32, -bound0, bound0)
    w1 = jax.random.uniform(
        k1w, (out_channels, out_channels, kernel_size), jnp.float32,
        -bound1, bound1)
    b1 = jax.random.uniform(k1b, (out_channels,), jnp.float32, -bound1, bound1)
    return w0, b0, w1, b1


def _reference(x, params):
    """Pure-JAX reference using lax conv (for a correctness sanity check)."""
    w0, b0, w1, b1 = params

    def conv(x, w, b):
        y = jax.lax.conv_general_dilated(
            x, w, window_strides=(1,), padding=[(2, 2)],
            dimension_numbers=("NCH", "OIH", "NCH"))
        return jnp.maximum(y + b[None, :, None], 0.0)

    return conv(conv(x, w0, b0), w1, b1)


if __name__ == "__main__":
    B, C_IN, C_OUT, L, K = 2, 4, 8, 16, 5

    key = jax.random.PRNGKey(0)
    kx, kp = jax.random.split(key)
    x = jax.random.normal(kx, (B, C_IN, L), dtype=jnp.float32)
    params = init_params(kp, C_IN, C_OUT, kernel_size=K)

    # f32 path (default): must match the f32 lax reference tightly.
    out = jax.block_until_ready(double_convolution(x, params))
    ref = _reference(x, params)
    assert out.shape == (B, C_OUT, L)
    assert jnp.allclose(out, ref, atol=1e-4, rtol=1e-4), (
        float(jnp.max(jnp.abs(out - ref))))

    # bf16 compute path (recommended on v6e/v7x): f32 accumulation, loose tol.
    out_bf16 = jax.block_until_ready(
        double_convolution(x, params, compute_dtype=jnp.bfloat16))
    assert out_bf16.shape == (B, C_OUT, L)
    assert jnp.allclose(out_bf16, ref, atol=5e-2, rtol=5e-2)

    print("KERNEL_OK")
</pallas_src>

<mosaic_0001>
module attributes {stable_mosaic.version = 11 : i64} {
  func.func @_fused_double_conv_kernel(%arg0: i32, %arg1: i32, %arg2: memref<1x4x136xf32, #tpu.memory_space<vmem>>, %arg3: memref<8x20xf32, #tpu.memory_space<vmem>>, %arg4: memref<8x1xf32, #tpu.memory_space<vmem>>, %arg5: memref<8x40xf32, #tpu.memory_space<vmem>>, %arg6: memref<8x1xf32, #tpu.memory_space<vmem>>, %arg7: memref<1x8x128xf32, #tpu.memory_space<vmem>>) attributes {dimension_semantics = [#tpu.dimension_semantics<parallel>, #tpu.dimension_semantics<parallel>], iteration_bounds = array<i64: 2, 1>, scalar_prefetch = 0 : i64, scratch_operands = 0 : i64, tpu.core_type = #tpu.core_type<tc>, window_params = [{transform_indices = @transform_0, window_bounds = array<i64: 1, 4, 136>}, {pipeline_mode = #tpu.pipeline_mode<synchronous>, transform_indices = @transform_1, window_bounds = array<i64: 8, 20>}, {pipeline_mode = #tpu.pipeline_mode<synchronous>, transform_indices = @transform_2, window_bounds = array<i64: 8, 1>}, {pipeline_mode = #tpu.pipeline_mode<synchronous>, transform_indices = @transform_3, window_bounds = array<i64: 8, 40>}, {pipeline_mode = #tpu.pipeline_mode<synchronous>, transform_indices = @transform_4, window_bounds = array<i64: 8, 1>}, {transform_indices = @transform_5, window_bounds = array<i64: 1, 8, 128>}]} {
    %c128_i32 = arith.constant 128 : i32
    %0 = arith.muli %arg1, %c128_i32 : i32
    %1 = tpu.assume_multiple %0, 128 : i32
    %c0 = arith.constant 0 : index
    %c0_0 = arith.constant 0 : index
    %2 = arith.index_cast %1 : i32 to index
    %3 = vector.load %arg2[%c0, %c0_0, %2] : memref<1x4x136xf32, #tpu.memory_space<vmem>>, vector<1x4x136xf32>
    %4 = vector.shape_cast %3 : vector<1x4x136xf32> to vector<4x136xf32>
    %5 = vector.extract_strided_slice %4 {offsets = [0, 0], sizes = [4, 132], strides = [1, 1]} : vector<4x136xf32> to vector<4x132xf32>
    %6 = vector.extract_strided_slice %4 {offsets = [0, 1], sizes = [4, 132], strides = [1, 1]} : vector<4x136xf32> to vector<4x132xf32>
    %7 = vector.extract_strided_slice %4 {offsets = [0, 2], sizes = [4, 132], strides = [1, 1]} : vector<4x136xf32> to vector<4x132xf32>
    %8 = vector.extract_strided_slice %4 {offsets = [0, 3], sizes = [4, 132], strides = [1, 1]} : vector<4x136xf32> to vector<4x132xf32>
    %9 = vector.extract_strided_slice %4 {offsets = [0, 4], sizes = [4, 132], strides = [1, 1]} : vector<4x136xf32> to vector<4x132xf32>
    %10 = tpu.concatenate %5, %6, %7, %8, %9 in 0 : vector<4x132xf32>, vector<4x132xf32>, vector<4x132xf32>, vector<4x132xf32>, vector<4x132xf32> -> vector<20x132xf32>
    %c0_1 = arith.constant 0 : index
    %c0_2 = arith.constant 0 : index
    %11 = vector.load %arg3[%c0_1, %c0_2] : memref<8x20xf32, #tpu.memory_space<vmem>>, vector<8x20xf32>
    %cst = arith.constant dense<0.000000e+00> : vector<8x132xf32>
    %12 = tpu.matmul %11, %10, %cst {dimension_numbers = #tpu.dot_dimension_numbers<[1], [0], [0], [1], [0, 0, 1, 1], [], []>} : vector<8x20xf32>, vector<20x132xf32>, vector<8x132xf32> -> vector<8x132xf32>
    %c0_3 = arith.constant 0 : index
    %c0_4 = arith.constant 0 : index
    %13 = vector.load %arg4[%c0_3, %c0_4] : memref<8x1xf32, #tpu.memory_space<vmem>>, vector<8x1xf32>
    %14 = vector.broadcast %13 : vector<8x1xf32> to vector<8x132xf32>
    %15 = arith.addf %12, %14 : vector<8x132xf32>
    %cst_5 = arith.constant 0.000000e+00 : f32
    %16 = vector.broadcast %cst_5 : f32 to vector<8x132xf32>
    %17 = arith.maximumf %15, %16 : vector<8x132xf32>
    %c128_i32_6 = arith.constant 128 : i32
    %18 = arith.muli %arg1, %c128_i32_6 : i32
    %c2_i32 = arith.constant 2 : i32
    %19 = arith.subi %18, %c2_i32 : i32
    %20 = tpu.iota {dimensions = array<i32: 1>} : vector<8x132xi32>
    %21 = vector.broadcast %19 : i32 to vector<8x132xi32>
    %22 = arith.addi %21, %20 : vector<8x132xi32>
    %c0_i32 = arith.constant 0 : i32
    %23 = vector.broadcast %c0_i32 : i32 to vector<8x132xi32>
    %24 = arith.cmpi sge, %22, %23 : vector<8x132xi32>
    %c16_i32 = arith.constant 16 : i32
    %25 = vector.broadcast %c16_i32 : i32 to vector<8x132xi32>
    %26 = arith.cmpi slt, %22, %25 : vector<8x132xi32>
    %27 = arith.andi %24, %26 : vector<8x132xi1>
    %cst_7 = arith.constant 0.000000e+00 : f32
    %28 = vector.broadcast %cst_7 : f32 to vector<8x132xf32>
    %29 = arith.select %27, %17, %28 : vector<8x132xi1>, vector<8x132xf32>
    %30 = vector.extract_strided_slice %29 {offsets = [0, 0], sizes = [8, 128], strides = [1, 1]} : vector<8x132xf32> to vector<8x128xf32>
    %31 = vector.extract_strided_slice %29 {offsets = [0, 1], sizes = [8, 128], strides = [1, 1]} : vector<8x132xf32> to vector<8x128xf32>
    %32 = vector.extract_strided_slice %29 {offsets = [0, 2], sizes = [8, 128], strides = [1, 1]} : vector<8x132xf32> to vector<8x128xf32>
    %33 = vector.extract_strided_slice %29 {offsets = [0, 3], sizes = [8, 128], strides = [1, 1]} : vector<8x132xf32> to vector<8x128xf32>
    %34 = vector.extract_strided_slice %29 {offsets = [0, 4], sizes = [8, 128], strides = [1, 1]} : vector<8x132xf32> to vector<8x128xf32>
    %35 = tpu.concatenate %30, %31, %32, %33, %34 in 0 : vector<8x128xf32>, vector<8x128xf32>, vector<8x128xf32>, vector<8x128xf32>, vector<8x128xf32> -> vector<40x128xf32>
    %c0_8 = arith.constant 0 : index
    %c0_9 = arith.constant 0 : index
    %36 = vector.load %arg5[%c0_8, %c0_9] : memref<8x40xf32, #tpu.memory_space<vmem>>, vector<8x40xf32>
    %cst_10 = arith.constant dense<0.000000e+00> : vector<8x128xf32>
    %37 = tpu.matmul %36, %35, %cst_10 {dimension_numbers = #tpu.dot_dimension_numbers<[1], [0], [0], [1], [0, 0, 1, 1], [], []>} : vector<8x40xf32>, vector<40x128xf32>, vector<8x128xf32> -> vector<8x128xf32>
    %c0_11 = arith.constant 0 : index
    %c0_12 = arith.constant 0 : index
    %38 = vector.load %arg6[%c0_11, %c0_12] : memref<8x1xf32, #tpu.memory_space<vmem>>, vector<8x1xf32>
    %39 = vector.broadcast %38 : vector<8x1xf32> to vector<8x128xf32>
    %40 = arith.addf %37, %39 : vector<8x128xf32>
    %cst_13 = arith.constant 0.000000e+00 : f32
    %41 = vector.broadcast %cst_13 : f32 to vector<8x128xf32>
    %42 = arith.maximumf %40, %41 : vector<8x128xf32>
    %c0_14 = arith.constant 0 : index
    %c0_15 = arith.constant 0 : index
    %c0_16 = arith.constant 0 : index
    %43 = vector.load %arg7[%c0_14, %c0_15, %c0_16] : memref<1x8x128xf32, #tpu.memory_space<vmem>>, vector<1x8x128xf32>
    %44 = vector.shape_cast %43 : vector<1x8x128xf32> to vector<8x128xf32>
    %45 = vector.shape_cast %42 : vector<8x128xf32> to vector<1x8x128xf32>
    tpu.vector_store %arg7[%c0_14, %c0_15, %c0_16], %45 {strides = array<i32>} : memref<1x8x128xf32, #tpu.memory_space<vmem>>, vector<1x8x128xf32>,
    return
  }
  func.func @transform_0(%arg0: i32, %arg1: i32) -> (i32, i32, i32) {
    %c0_i32 = arith.constant 0 : i32
    %c0_i32_0 = arith.constant 0 : i32
    %c0_i32_1 = arith.constant 0 : i32
    return %arg0, %c0_i32, %c0_i32_0 : i32, i32, i32
  }
  func.func @transform_1(%arg0: i32, %arg1: i32) -> (i32, i32) {
    %c0_i32 = arith.constant 0 : i32
    %c0_i32_0 = arith.constant 0 : i32
    %c0_i32_1 = arith.constant 0 : i32
    return %c0_i32, %c0_i32_0 : i32, i32
  }
  func.func @transform_2(%arg0: i32, %arg1: i32) -> (i32, i32) {
    %c0_i32 = arith.constant 0 : i32
    %c0_i32_0 = arith.constant 0 : i32
    %c0_i32_1 = arith.constant 0 : i32
    return %c0_i32, %c0_i32_0 : i32, i32
  }
  func.func @transform_3(%arg0: i32, %arg1: i32) -> (i32, i32) {
    %c0_i32 = arith.constant 0 : i32
    %c0_i32_0 = arith.constant 0 : i32
    %c0_i32_1 = arith.constant 0 : i32
    return %c0_i32, %c0_i32_0 : i32, i32
  }
  func.func @transform_4(%arg0: i32, %arg1: i32) -> (i32, i32) {
    %c0_i32 = arith.constant 0 : i32
    %c0_i32_0 = arith.constant 0 : i32
    %c0_i32_1 = arith.constant 0 : i32
    return %c0_i32, %c0_i32_0 : i32, i32
  }
  func.func @transform_5(%arg0: i32, %arg1: i32) -> (i32, i32, i32) {
    %c0_i32 = arith.constant 0 : i32
    %c0_i32_0 = arith.constant 0 : i32
    return %arg0, %c0_i32, %arg1 : i32, i32, i32
  }
}

</mosaic_0001>

<llo_original>
// kernel: tpu_custom_call.1
$region0: #{tpu_custom_call.1}
  #allocation0 [shape = 'u32[]', space=smem, size = 0x4, offset = 0x4, fixed_abs, tag = 'smem constant byte address 0x4 - core index']
  #allocation1 [shape = 'u32[72,128]{1,0:T(1,128)}', space=vmem, size = 0x9000, scoped, tag = 'internal scratch']
  %s0 = inlined_call_operand.vmem [shape: f32[2,4,136], index: 0, kind: input, shape index: {}]
  %s1 = inlined_call_operand.hbm [shape: f32[8,20], index: 1, kind: input, shape index: {}]
  %s2 = inlined_call_operand.vmem [shape: f32[8,1], index: 2, kind: input, shape index: {}]
  %s3 = inlined_call_operand.hbm [shape: f32[8,40], index: 3, kind: input, shape index: {}]
  %s4 = inlined_call_operand.vmem [shape: f32[8,1], index: 4, kind: input, shape index: {}]
  %s5 = inlined_call_operand.hbm [shape: f32[2,8,128], index: 5, kind: output, shape index: {}]
  %s6 = sld [smem:[#allocation0]]
  $region61: #{tpu_custom_call.1} parent=0
    _
  %s8 = ssub.s32 1, %s6
  %s9 = scalar_select 0, %s8, %s6
  $region1: #{tpu_custom_call.1} parent=0
    #allocation2 [shape = 'u8[4096]{0}', space=vmem, size = 0x1000, scoped, tag = 'input window, operand 1, single buffered']
    #allocation3 [shape = 's32[2]{0}', space=sflag, size = 0x8, scoped, tag = 'scoped memory for tpu_custom_call.1']
    #allocation4 [shape = 's32[2]{0}', space=sflag, size = 0x8, scoped, tag = 'scoped memory for tpu_custom_call.1']
    #allocation5 [shape = 'u8[4096]{0}', space=vmem, size = 0x1000, scoped, tag = 'input window, operand 3, single buffered']
    #allocation6 [shape = 's32[1]{0}', space=sflag, size = 0x4, scoped, tag = 'scoped memory for tpu_custom_call.1']
    #allocation7 [shape = 'u8[8192]{0}', space=vmem, size = 0x2000, scoped, tag = 'output window, operand 0']
    %10 = vsyncpa [#allocation3], 0
    %11 = vsyncpa [#allocation6], 0
    %12 = vsyncpa [#allocation4], 0
    %s13 = scalar_lea.sflag [#allocation4], 1
    %14 = vsyncpa %s13, 0
    loop: start=0, step=1, limit=4
    $region2: #{tpu_custom_call.1} parent=1 // loop_pre_header
      _
    $region3: #{tpu_custom_call.1} parent=1 // loop_header
      %s16 = sphi 0, %s20
      %p17 = scmp.ge.s32.totalorder %s16, 4
      %s23 = sphi 0, %s35
      %s24 = sphi 0, %s31
      %s25 = sphi 0, %s23
      %s26 = sphi 0, %s24
      %s27 = sphi 0, %s25
      %s28 = sphi 0, %s26
      %s38 = sphi 0, %s40
      %s41 = sphi 0, %s38
      %s42 = sphi 0, %s41
      %s58 = sphi 0, %s42
      %s62 = sphi 0, %s62
      %s64 = sphi 0, %s62
      %s65 = sphi 0, %s64
      %s79 = sphi 0, %s65
      %s83 = sphi 0, %s83
      %s85 = sphi 0, %s83
      %s86 = sphi 0, %s85
      %s100 = sphi 0, %s86
      %s104 = sphi 0, %s104
      %s106 = sphi 0, %s104
      %s107 = sphi 0, %s106
      %s121 = sphi 0, %s107
      %s125 = sphi 0, %s125
      %s127 = sphi 0, %s125
      %s128 = sphi 0, %s127
      %s142 = sphi 0, %s128
      %s150 = sphi 0, %s152
      %s153 = sphi 0, %s150
      %s154 = sphi 0, %s153
      %s170 = sphi 0, %s154
    $region4: #{tpu_custom_call.1} parent=1 // loop_header_branch
      %19 = sbr.rel (%p17) target = $region8
    $region5: #{tpu_custom_call.1} parent=1 // loop_body
      %s21 = ssub.s32 %s16, 1
      %s22 = ssub.s32 %s16, 2
      %s29 = sadd.s32 1, %s24
      %p30 = scmp.ge.s32.totalorder %s29, 1
      %s31 = scalar_select %p30, 0, %s29
      %s32 = sadd.s32 1, %s23
      %s33 = scalar_select %p30, %s32, %s23
      %p34 = scmp.ge.s32.totalorder %s33, 2
      %s35 = scalar_select %p34, 0, %s33
      %s36 = ssub.s32 %s23, %s35
      %p37 = scmp.eq.s32.totalorder %s36, 0
      %s39 = sadd.s32 %s38, 1
      %s40 = scalar_select %p37, %s38, %s39
      %p43 = pneg %p37
      %p44 = scmp.eq.s32.totalorder %s16, 1
      %p45 = por %p43, %p44
      %p46 = scmp.ne.s32.totalorder %s38, %s41
      %p47 = scmp.eq.s32.totalorder %s16, 0
      %p48 = por %p46, %p47
      %p49 = scmp.ne.s32.totalorder %s38, %s41
      %p50 = scmp.eq.s32.totalorder %s21, 1
      %p51 = por %p49, %p50
      %p52 = scmp.ne.s32.totalorder %s41, %s42
      %p53 = scmp.eq.s32.totalorder %s21, 0
      %p54 = por %p52, %p53
      %p55 = scmp.ne.s32.totalorder %s41, %s42
      %p56 = scmp.eq.s32.totalorder %s22, 1
      %p57 = por %p55, %p56
      %p59 = scmp.ne.s32.totalorder %s42, %s58
      %p60 = scmp.eq.s32.totalorder %s22, 0
      %p61 = por %p59, %p60
      %s63 = sadd.s32 %s62, 1
      %p66 = scmp.eq.s32.totalorder %s16, 1
      %p67 = scmp.ne.s32.totalorder %s62, %s64
      %p68 = scmp.eq.s32.totalorder %s16, 0
      %p69 = por %p67, %p68
      %p70 = scmp.ne.s32.totalorder %s62, %s64
      %p71 = scmp.eq.s32.totalorder %s21, 1
      %p72 = por %p70, %p71
      %p73 = scmp.ne.s32.totalorder %s64, %s65
      %p74 = scmp.eq.s32.totalorder %s21, 0
      %p75 = por %p73, %p74
      %p76 = scmp.ne.s32.totalorder %s64, %s65
      %p77 = scmp.eq.s32.totalorder %s22, 1
      %p78 = por %p76, %p77
      %p80 = scmp.ne.s32.totalorder %s65, %s79
      %p81 = scmp.eq.s32.totalorder %s22, 0
      %p82 = por %p80, %p81
      %s84 = sadd.s32 %s83, 1
      %p87 = scmp.eq.s32.totalorder %s16, 1
      %p88 = scmp.ne.s32.totalorder %s83, %s85
      %p89 = scmp.eq.s32.totalorder %s16, 0
      %p90 = por %p88, %p89
      %p91 = scmp.ne.s32.totalorder %s83, %s85
      %p92 = scmp.eq.s32.totalorder %s21, 1
      %p93 = por %p91, %p92
      %p94 = scmp.ne.s32.totalorder %s85, %s86
      %p95 = scmp.eq.s32.totalorder %s21, 0
      %p96 = por %p94, %p95
      %p97 = scmp.ne.s32.totalorder %s85, %s86
      %p98 = scmp.eq.s32.totalorder %s22, 1
      %p99 = por %p97, %p98
      %p101 = scmp.ne.s32.totalorder %s86, %s100
      %p102 = scmp.eq.s32.totalorder %s22, 0
      %p103 = por %p101, %p102
      %s105 = sadd.s32 %s104, 1
      %p108 = scmp.eq.s32.totalorder %s16, 1
      %p109 = scmp.ne.s32.totalorder %s104, %s106
      %p110 = scmp.eq.s32.totalorder %s16, 0
      %p111 = por %p109, %p110
      %p112 = scmp.ne.s32.totalorder %s104, %s106
      %p113 = scmp.eq.s32.totalorder %s21, 1
      %p114 = por %p112, %p113
      %p115 = scmp.ne.s32.totalorder %s106, %s107
      %p116 = scmp.eq.s32.totalorder %s21, 0
      %p117 = por %p115, %p116
      %p118 = scmp.ne.s32.totalorder %s106, %s107
      %p119 = scmp.eq.s32.totalorder %s22, 1
      %p120 = por %p118, %p119
      %p122 = scmp.ne.s32.totalorder %s107, %s121
      %p123 = scmp.eq.s32.totalorder %s22, 0
      %p124 = por %p122, %p123
      %s126 = sadd.s32 %s125, 1
      %p129 = scmp.eq.s32.totalorder %s16, 1
      %p130 = scmp.ne.s32.totalorder %s125, %s127
      %p131 = scmp.eq.s32.totalorder %s16, 0
      %p132 = por %p130, %p131
      %p133 = scmp.ne.s32.totalorder %s125, %s127
      %p134 = scmp.eq.s32.totalorder %s21, 1
      %p135 = por %p133, %p134
      %p136 = scmp.ne.s32.totalorder %s127, %s128
      %p137 = scmp.eq.s32.totalorder %s21, 0
      %p138 = por %p136, %p137
      %p139 = scmp.ne.s32.totalorder %s127, %s128
      %p140 = scmp.eq.s32.totalorder %s22, 1
      %p141 = por %p139, %p140
      %p143 = scmp.ne.s32.totalorder %s128, %s142
      %p144 = scmp.eq.s32.totalorder %s22, 0
      %p145 = por %p143, %p144
      %s146 = ssub.s32 %s23, %s35
      %s147 = ssub.s32 %s24, %s31
      %s148 = sor.u32 %s146, %s147
      %p149 = scmp.eq.s32.totalorder %s148, 0
      %s151 = sadd.s32 %s150, 1
      %s152 = scalar_select %p149, %s150, %s151
      %p155 = pneg %p149
      %p156 = scmp.eq.s32.totalorder %s16, 1
      %p157 = por %p155, %p156
      %p158 = scmp.ne.s32.totalorder %s150, %s153
      %p159 = scmp.eq.s32.totalorder %s16, 0
      %p160 = por %p158, %p159
      %p161 = scmp.ne.s32.totalorder %s150, %s153
      %p162 = scmp.eq.s32.totalorder %s21, 1
      %p163 = por %p161, %p162
      %p164 = scmp.ne.s32.totalorder %s153, %s154
      %p165 = scmp.eq.s32.totalorder %s21, 0
      %p166 = por %p164, %p165
      %p167 = scmp.ne.s32.totalorder %s153, %s154
      %p168 = scmp.eq.s32.totalorder %s22, 1
      %p169 = por %p167, %p168
      %p171 = scmp.ne.s32.totalorder %s154, %s170
      %p172 = scmp.eq.s32.totalorder %s22, 0
      %p173 = por %p171, %p172
      %p174 = scmp.le.s32.totalorder 1, %s16
      %p175 = scmp.lt.s32.totalorder %s16, 3
      %p176 = pnand %p174, %p175
      %p177 = pneg %p176
      // Predicated region
      $region9: #{tpu_custom_call.1} parent=5 // pred_check
        _
      $region10: #{tpu_custom_call.1} parent=5 // pred_check_branch
        %179 = sbr.rel (%p176) target = $region12
      $region11: #{tpu_custom_call.1} parent=5 // pred_region
        %s180 = ssub.s32 %s16, 1
        // Predicated region
        $region13: #{tpu_custom_call.1} parent=11 // pred_check
          %p181 = pneg %p75
        $region14: #{tpu_custom_call.1} parent=11 // pred_check_branch
          %183 = sbr.rel (%p181) target = $region16
        $region15: #{tpu_custom_call.1} parent=11 // pred_region
          %185 = vsyncadd [#allocation3], 0
          %s187 = sshll.u32 %s1, 4
          %s188 = int_to_ptr.hbm [resolvable:$true] %s187
          %s189 = sshll.u32 [#allocation2], 4
          %s190 = int_to_ptr.vmem [resolvable:$true] %s189
          %192 = dma.hbm_to_vmem [thread:$0]  %s188, 128, %s190, [#allocation3]
        $region16: #{tpu_custom_call.1} parent=11 // pred_fallthru
          _
        // Predicated region
        $region17: #{tpu_custom_call.1} parent=11 // pred_check
          %p193 = pneg %p96
        $region18: #{tpu_custom_call.1} parent=11 // pred_check_branch
          %195 = sbr.rel (%p193) target = $region20
        $region19: #{tpu_custom_call.1} parent=11 // pred_region
          _
        $region20: #{tpu_custom_call.1} parent=11 // pred_fallthru
          _
        // Predicated region
        $region21: #{tpu_custom_call.1} parent=11 // pred_check
          %p196 = pneg %p117
        $region22: #{tpu_custom_call.1} parent=11 // pred_check_branch
          %198 = sbr.rel (%p196) target = $region24
        $region23: #{tpu_custom_call.1} parent=11 // pred_region
          %200 = vsyncadd [#allocation6], 0
          %s202 = sshll.u32 %s3, 4
          %s203 = int_to_ptr.hbm [resolvable:$true] %s202
          %s204 = sshll.u32 [#allocation5], 4
          %s205 = int_to_ptr.vmem [resolvable:$true] %s204
          %207 = dma.hbm_to_vmem [thread:$0]  %s203, 128, %s205, [#allocation6]
        $region24: #{tpu_custom_call.1} parent=11 // pred_fallthru
          _
        // Predicated region
        $region25: #{tpu_custom_call.1} parent=11 // pred_check
          %p208 = pneg %p138
        $region26: #{tpu_custom_call.1} parent=11 // pred_check_branch
          %210 = sbr.rel (%p208) target = $region28
        $region27: #{tpu_custom_call.1} parent=11 // pred_region
          _
        $region28: #{tpu_custom_call.1} parent=11 // pred_fallthru
          _
      $region12: #{tpu_custom_call.1} parent=5 // pred_fallthru
        _
      %p211 = scmp.lt.s32.totalorder %s16, 2
      // Predicated region
      $region29: #{tpu_custom_call.1} parent=5 // pred_check
        %p212 = pneg %p211
      $region30: #{tpu_custom_call.1} parent=5 // pred_check_branch
        %214 = sbr.rel (%p212) target = $region32
      $region31: #{tpu_custom_call.1} parent=5 // pred_region
        // Predicated region
        $region33: #{tpu_custom_call.1} parent=31 // pred_check
          %p215 = pneg %p48
        $region34: #{tpu_custom_call.1} parent=31 // pred_check_branch
          %217 = sbr.rel (%p215) target = $region36
        $region35: #{tpu_custom_call.1} parent=31 // pred_region
          %p218 = scmp.lt.s32.totalorder %s23, 1
          %s219 = scalar_select %p218, %s23, 1
          %s220 = smul.addr %s219, 2
          %s221 = smul.addr %s220, 4
          %s222 = scalar_lea.vmem %s0, %s221
        $region36: #{tpu_custom_call.1} parent=31 // pred_fallthru
          _
      $region32: #{tpu_custom_call.1} parent=5 // pred_fallthru
        _
      %p223 = scmp.le.s32.totalorder 1, %s16
      %p224 = scmp.lt.s32.totalorder %s16, 3
      %p225 = pnand %p223, %p224
      %p226 = pneg %p225
      // Predicated region
      $region37: #{tpu_custom_call.1} parent=5 // pred_check
        _
      $region38: #{tpu_custom_call.1} parent=5 // pred_check_branch
        %228 = sbr.rel (%p225) target = $region40
      $region39: #{tpu_custom_call.1} parent=5 // pred_region
        %s229 = ssub.s32 %s16, 1
        // Predicated region
        $region41: #{tpu_custom_call.1} parent=39 // pred_check
          %p230 = pneg %p75
        $region42: #{tpu_custom_call.1} parent=39 // pred_check_branch
          %232 = sbr.rel (%p230) target = $region44
        $region43: #{tpu_custom_call.1} parent=39 // pred_region
          %234 = dma.done [#allocation3], 128
        $region44: #{tpu_custom_call.1} parent=39 // pred_fallthru
          _
        // Predicated region
        $region45: #{tpu_custom_call.1} parent=39 // pred_check
          %p235 = pneg %p117
        $region46: #{tpu_custom_call.1} parent=39 // pred_check_branch
          %237 = sbr.rel (%p235) target = $region48
        $region47: #{tpu_custom_call.1} parent=39 // pred_region
          %239 = dma.done [#allocation6], 128
        $region48: #{tpu_custom_call.1} parent=39 // pred_fallthru
          _
        %p240 = scmp.lt.s32.totalorder %s25, 1
        %s241 = scalar_select %p240, %s25, 1
        %s242 = smul.addr %s241, 2
        %s243 = smul.addr %s242, 4
        %s244 = scalar_lea.vmem %s0, %s243
        %p245 = pneg %p54
        %p246 = pneg %p51
        %p247 = pneg %p75
        %p248 = pneg %p72
        %p249 = pneg %p96
        %p250 = pneg %p93
        %p251 = pneg %p117
        %p252 = pneg %p114
        %p253 = pneg %p138
        %p254 = pneg %p135
        %p255 = pneg %p166
        %p256 = pneg %p163
        %s257 = sand.u32 %s153, 1
        %s258 = scalar_lea.sflag [#allocation4], %s257
        %s259 = sand.u32 %s153, 1
        %s260 = smul.addr %s259, 8
        %s261 = scalar_lea.vmem [#allocation7], %s260
        %p262 = scmp.lt.s32.totalorder %s25, 1
        %s263 = scalar_select %p262, %s25, 1
        %s264 = smul.addr %s263, 2
        %s265 = smul.addr %s264, 4
        %s266 = scalar_lea.vmem %s0, %s265
        %s267 = smul.u32 %s26, 128
        %s268 = sshra.s32 %s267, 7
        %s269 = sand.u32 %s267, 127
        %s270 = smul.addr %s268, 4
        %s271 = scalar_lea.vmem %s266, %s270
        %v272 = vld [vmem:[%s271] sm:$0xff]
        %274 = vst [vmem:[#allocation1] ss:$2 sm:$0xff] %v272
        %v275 = vld.sshfl [vmem:[#allocation1] sm:$0xff pattern:$0x75316420]
        %v276 = vld.sshfl [vmem:[#allocation1 + $0x8] sm:$0xff pattern:$0x75316420]
        %s279 = scalar_lea.vmem [#allocation1], 1
        %280 = vst [vmem:[%s279] ss:$2 sm:$0xff] %v272
        %v281 = vld.sshfl [vmem:[#allocation1] sm:$0xff pattern:$0x75316420]
        %v282 = vld.sshfl [vmem:[#allocation1 + $0x8] sm:$0xff pattern:$0x75316420]
        %283 = vrot.lane.b32.xlu0 %v281, 127
        %v284 = vpop.permute.xlu0 %283
        %285 = vrot.lane.b32.xlu0 %v282, 127
        %v286 = vpop.permute.xlu0 %285
        %vm287 = vcmask 1039360
        %v288 = vsel %vm287, %v284, %v286
        %291 = vst [vmem:[#allocation1] ss:$2 sm:$0xff] %v272
        %v292 = vld.sshfl [vmem:[#allocation1] sm:$0xff pattern:$0x75316420]
        %v293 = vld.sshfl [vmem:[#allocation1 + $0x8] sm:$0xff pattern:$0x75316420]
        %294 = vrot.lane.b32.xlu0 %v292, 126
        %v295 = vpop.permute.xlu0 %294
        %296 = vrot.lane.b32.xlu0 %v293, 126
        %v297 = vpop.permute.xlu0 %296
        %vm298 = vcmask 1031168
        %v299 = vsel %vm298, %v295, %v297
        %s302 = scalar_lea.vmem [#allocation1], 1
        %303 = vst [vmem:[%s302] ss:$2 sm:$0xff] %v272
        %v304 = vld.sshfl [vmem:[#allocation1] sm:$0xff pattern:$0x75316420]
        %v305 = vld.sshfl [vmem:[#allocation1 + $0x8] sm:$0xff pattern:$0x75316420]
        %306 = vrot.lane.b32.xlu0 %v304, 125
        %v307 = vpop.permute.xlu0 %306
        %308 = vrot.lane.b32.xlu0 %v305, 125
        %v309 = vpop.permute.xlu0 %308
        %vm310 = vcmask 1022976
        %v311 = vsel %vm310, %v307, %v309
        %314 = vst [vmem:[#allocation1] ss:$2 sm:$0xff] %v272
        %v315 = vld.sshfl [vmem:[#allocation1] sm:$0xff pattern:$0x75316420]
        %v316 = vld.sshfl [vmem:[#allocation1 + $0x8] sm:$0xff pattern:$0x75316420]
        %317 = vrot.lane.b32.xlu0 %v315, 124
        %v318 = vpop.permute.xlu0 %317
        %319 = vrot.lane.b32.xlu0 %v316, 124
        %v320 = vpop.permute.xlu0 %319
        %vm321 = vcmask 1014784
        %v322 = vsel %vm321, %v318, %v320
        %vm323 = vcmask 1043456
        %v324 = vsel %vm323, %v275, %v288
        %v325 = vsel %vm323, %v276, %v286
        %v326 = vsel %vm323, %v299, %v311
        %v327 = vsel %vm323, %v297, %v309
        %v328 = vld [vmem:[#allocation2] sm:$0xff]
        %v329 = vld [vmem:[%s2] sm:$0xff]
        %331 = vset.pattern.permute.xlu0 0
        %332 = vperm.xlu0 %331, %v329
        %v333 = vpop.permute.xlu0 %332
        %vm335 = vcmask 162816
        %v337 = vsel %vm335, %v328, 0
        %v339 = vsel %vm323, %v322, 0
        %v341 = vsel %vm323, %v320, 0
        %343 = vmatpush.msra.mxu0 0.0
        %344 = vmatpush.msra.mxu0 0.0
        %345 = vmatpush.msra.mxu0 0.0
        %346 = vmatpush.msra.mxu0 0.0
        %347 = vmatpush.msra.mxu0 0.0
        %348 = vmatpush.msra.mxu0 0.0
        %349 = vmatpush.msra.mxu0 0.0
        %350 = vmatpush.msra.mxu0 0.0
        %351 = vmatpush.msra.mxu0 0.0
        %352 = vmatpush.msra.mxu0 0.0
        %353 = vmatpush.msra.mxu0 0.0
        %354 = vmatpush.msra.mxu0 0.0
        %355 = vmatpush.msra.mxu0 0.0
        %356 = vmatpush.msra.mxu0 %v339
        %357 = vmatpush.msra.mxu0 %v326
        %358 = vmatpush.msra.mxu0 %v324
        %359 = vmatmul.f32.gmra.mxu0 %v337
        %v360 = vpop.f32.mrf.mxu0
        %v361 = vadd.f32 %v333, %v360
        %362 = vdwg.mxu0
        %363 = vmatpush.msra.mxu0 0.0
        %364 = vmatpush.msra.mxu0 0.0
        %365 = vmatpush.msra.mxu0 0.0
        %366 = vmatpush.msra.mxu0 0.0
        %367 = vmatpush.msra.mxu0 0.0
        %368 = vmatpush.msra.mxu0 0.0
        %369 = vmatpush.msra.mxu0 0.0
        %370 = vmatpush.msra.mxu0 0.0
        %371 = vmatpush.msra.mxu0 0.0
        %372 = vmatpush.msra.mxu0 0.0
        %373 = vmatpush.msra.mxu0 0.0
        %374 = vmatpush.msra.mxu0 0.0
        %375 = vmatpush.msra.mxu0 0.0
        %376 = vmatpush.msra.mxu0 %v341
        %377 = vmatpush.msra.mxu0 %v327
        %378 = vmatpush.msra.mxu0 %v325
        %379 = vmatmul.f32.gmra.mxu0 %v337
        %v380 = vpop.f32.mrf.mxu0
        %v381 = vadd.f32 %v333, %v380
        %382 = vdwg.mxu0
        %v383 = vmax.f32 %v361, 0.0
        %v384 = vmax.f32 %v381, 0.0
        %s385 = ssub.s32 %s267, 2
        %v386 = vlaneseq
        %v387 = vand.u32 %v386, 127
        %v388 = vadd.s32 %v387, 128
        %v389 = vstv %s385
        %v390 = vadd.s32 %v389, %v387
        %v391 = vadd.s32 %v389, %v388
        %vm392 = vcmp.ge.s32.totalorder %v390, 0
        %vm393 = vcmp.ge.s32.totalorder %v391, 0
        %vm394 = vcmp.lt.s32.totalorder %v390, 16
        %vm395 = vcmp.lt.s32.totalorder %v391, 16
        %vm396 = vmand %vm392, %vm394
        %vm397 = vmand %vm393, %vm395
        %v398 = vsel %vm396, %v383, 0.0
        %v399 = vsel %vm397, %v384, 0.0
        %402 = vrot.lane.b32.xlu0 %v398, 127
        %v403 = vpop.permute.xlu0 %402
        %404 = vrot.lane.b32.xlu0 %v399, 127
        %v405 = vpop.permute.xlu0 %404
        %v406 = vsel %vm287, %v403, %v405
        %408 = vrot.lane.b32.xlu0 %v398, 126
        %v409 = vpop.permute.xlu0 %408
        %410 = vrot.lane.b32.xlu0 %v399, 126
        %v411 = vpop.permute.xlu0 %410
        %v412 = vsel %vm298, %v409, %v411
        %414 = vrot.lane.b32.xlu0 %v398, 125
        %v415 = vpop.permute.xlu0 %414
        %416 = vrot.lane.b32.xlu0 %v399, 125
        %v417 = vpop.permute.xlu0 %416
        %v418 = vsel %vm310, %v415, %v417
        %420 = vrot.lane.b32.xlu0 %v398, 124
        %v421 = vpop.permute.xlu0 %420
        %422 = vrot.lane.b32.xlu0 %v399, 124
        %v423 = vpop.permute.xlu0 %422
        %v424 = vsel %vm321, %v421, %v423
        %v426 = vld [vmem:[#allocation5] sm:$0xff]
        %v427 = vld [vmem:[%s4] sm:$0xff]
        %429 = vset.pattern.permute.xlu0 0
        %430 = vperm.xlu0 %429, %v427
        %v431 = vpop.permute.xlu0 %430
        %vm433 = vcmask 326656
        %v435 = vsel %vm433, %v426, 0
        %437 = vmatpush.msra.mxu0 0.0
        %438 = vmatpush.msra.mxu0 0.0
        %439 = vmatpush.msra.mxu0 0.0
        %440 = vmatpush.msra.mxu0 0.0
        %441 = vmatpush.msra.mxu0 0.0
        %442 = vmatpush.msra.mxu0 0.0
        %443 = vmatpush.msra.mxu0 0.0
        %444 = vmatpush.msra.mxu0 0.0
        %445 = vmatpush.msra.mxu0 0.0
        %446 = vmatpush.msra.mxu0 0.0
        %447 = vmatpush.msra.mxu0 0.0
        %448 = vmatpush.msra.mxu0 %v424
        %449 = vmatpush.msra.mxu0 %v418
        %450 = vmatpush.msra.mxu0 %v412
        %451 = vmatpush.msra.mxu0 %v406
        %452 = vmatpush.msra.mxu0 %v398
        %453 = vmatmul.f32.gmra.mxu0 %v435
        %v454 = vpop.f32.mrf.mxu0
        %v455 = vadd.f32 %v431, %v454
        %456 = vdwg.mxu0
        %v457 = vmax.f32 %v455, 0.0
        %458 = vst [vmem:[%s261] sm:$0xff] %v457
        %s459 = sand.u32 %s153, 1
        %s460 = scalar_lea.sflag [#allocation4], %s459
        %s461 = sand.u32 %s153, 1
        %s462 = smul.addr %s461, 8
        %s463 = scalar_lea.vmem [#allocation7], %s462
        // Predicated region
        $region49: #{tpu_custom_call.1} parent=39 // pred_check
          %p464 = pneg %p163
        $region50: #{tpu_custom_call.1} parent=39 // pred_check_branch
          %466 = sbr.rel (%p464) target = $region52
        $region51: #{tpu_custom_call.1} parent=39 // pred_region
          %468 = vsyncadd %s460, 0
          %s469 = sadd.s32 %s26, %s25
          %s470 = smul.addr %s469, 8
          %s471 = scalar_lea.hbm %s5, %s470
          %s473 = sshll.u32 %s463, 4
          %s474 = int_to_ptr.vmem [resolvable:$true] %s473
          %s475 = sshll.u32 %s471, 4
          %s476 = int_to_ptr.hbm [resolvable:$true] %s475
          %478 = dma.vmem_to_hbm [thread:$0]  %s474, 128, %s476, %s460
        $region52: #{tpu_custom_call.1} parent=39 // pred_fallthru
          _
      $region40: #{tpu_custom_call.1} parent=5 // pred_fallthru
        _
      %p479 = scmp.le.s32.totalorder 2, %s16
      // Predicated region
      $region53: #{tpu_custom_call.1} parent=5 // pred_check
        %p480 = pneg %p479
      $region54: #{tpu_custom_call.1} parent=5 // pred_check_branch
        %482 = sbr.rel (%p480) target = $region56
      $region55: #{tpu_custom_call.1} parent=5 // pred_region
        %s483 = ssub.s32 %s16, 2
        // Predicated region
        $region57: #{tpu_custom_call.1} parent=55 // pred_check
          %p484 = pneg %p169
        $region58: #{tpu_custom_call.1} parent=55 // pred_check_branch
          %486 = sbr.rel (%p484) target = $region60
        $region59: #{tpu_custom_call.1} parent=55 // pred_region
          %s487 = sand.u32 %s154, 1
          %s488 = scalar_lea.sflag [#allocation4], %s487
          %s489 = sand.u32 %s154, 1
          %s490 = smul.addr %s489, 8
          %s491 = scalar_lea.vmem [#allocation7], %s490
          %493 = dma.done %s488, 128
        $region60: #{tpu_custom_call.1} parent=55 // pred_fallthru
          _
      $region56: #{tpu_custom_call.1} parent=5 // pred_fallthru
        _
    $region6: #{tpu_custom_call.1} parent=1 // loop_footer
      %s20 = sadd.s32 1, %s16
    $region7: #{tpu_custom_call.1} parent=1 // loop_footer_branch
      %15 = sbr.rel target = $region3
    $region8: #{tpu_custom_call.1} parent=1 // loop_exit
      _
    %494 = vsyncpa [#allocation3], 1
    %s495 = scalar_lea.sflag [#allocation3], 1
    %496 = vsyncpa %s495, 1
    %497 = vsyncpa [#allocation6], 1
    %498 = vsyncpa [#allocation4], 1
    %s499 = scalar_lea.sflag [#allocation4], 1
    %500 = vsyncpa %s499, 1

</llo_original>
